<compile_context>
chip_gen: v5e
topology: v5e:2x2
jax: 0.10.0
libtpu: 0.0.40
codegen_flags: <defaults>
</compile_context>

<pallas_src>
import math

import jax
import jax.numpy as jnp
from jax.experimental import pallas as pl
from jax.experimental.pallas import tpu as pltpu


def _scale_kernel(x_ref, scale_ref, out_ref):
    """out = x * scale, broadcasting scale (1, C) over the (TB, C) batch tile."""
    out_ref[...] = (x_ref[...] * scale_ref[...]).astype(out_ref.dtype)


def _per_buffer_tile_budget_bytes():
    """Generation-aware per-buffer tile budget (bytes)."""
    vmem = None
    try:
        info = pltpu.get_tpu_info()
        for attr in ("vmem_capacity_bytes", "vmem_size_bytes", "vmem_bytes"):
            val = getattr(info, attr, None)
            if val:
                vmem = int(val)
                break
    except Exception:
        vmem = None
    if vmem is None:
        vmem = 64 * 1024 * 1024  # conservative: assume v7x-sized (64 MiB/TC) VMEM
    # in + out double buffers ~= 4x tile; keep well under physical VMEM.
    return int(min(8 << 20, max(2 << 20, vmem // 16)))


def _broadcast_scale_2d(x2d, scale2d):
    """Run the Pallas broadcast-multiply over a 2-D (R, C) slab."""
    R, C = x2d.shape
    itemsize = jnp.dtype(x2d.dtype).itemsize
    sublane = {4: 8, 2: 16, 1: 32}.get(itemsize, 8)
    bytes_per_row = max(C * itemsize, 1)

    budget = _per_buffer_tile_budget_bytes()
    budget_rows = max(sublane, budget // bytes_per_row)
    if R <= budget_rows:
        tb = R  # single block covering the full row extent (always legal)
    else:
        tb = max(sublane, (budget_rows // sublane) * sublane)

    tile_bytes = tb * bytes_per_row
    # 2x(in) + 2x(out) double buffers + scale + headroom.
    vmem_limit = int(max(32 << 20, 5 * tile_bytes + (4 << 20)))

    return pl.pallas_call(
        _scale_kernel,
        out_shape=jax.ShapeDtypeStruct((R, C), x2d.dtype),
        grid_spec=pltpu.PrefetchScalarGridSpec(
            num_scalar_prefetch=0,
            grid=(pl.cdiv(R, tb),),                        # ragged grid: no pad/slice
            in_specs=[
                pl.BlockSpec((tb, C), lambda i: (i, 0)),   # x batch tile
                pl.BlockSpec((1, C), lambda i: (0, 0)),    # precomputed scale
            ],
            out_specs=pl.BlockSpec((tb, C), lambda i: (i, 0)),
        ),
        compiler_params=pltpu.CompilerParams(
            dimension_semantics=("parallel",),             # independent tiles
            vmem_limit_bytes=vmem_limit,
        ),
    )(x2d, scale2d)


def scaling_layer(x, log_scale_vector, logdet, invert=False):
    """x: (B, D), log_scale_vector: (1, D), logdet: scalar-like."""
    B, D = x.shape
    assert log_scale_vector.shape == (1, D)
    sign = jnp.float32(-1.0 if invert else 1.0)

    # --- scalar path: log-det update, done once in the wrapper (O(D)) ---
    logdet_arr = jnp.asarray(logdet)
    ld_dtype = jnp.result_type(logdet_arr.dtype, log_scale_vector.dtype)
    ldj = jnp.sum(log_scale_vector.astype(jnp.float32))
    new_logdet = (logdet_arr.astype(jnp.float32) + sign * ldj).astype(ld_dtype)

    # --- precompute the (1, D) scale once (EUP exp hoisted out of the loop) ---
    scale = jnp.exp(sign * log_scale_vector.astype(jnp.float32)).astype(x.dtype)

    # --- lane-dense slab layout when D is not a multiple of 128 ---
    if D % 128 != 0:
        L = (D * 128) // math.gcd(D, 128)   # lcm(D, 128)
        g = L // D                          # input rows per slab row
        if B % g == 0 and B >= g:
            x_slab = x.reshape(B // g, L)             # contiguous -> free reshape
            scale_slab = jnp.tile(scale, (1, g))      # (1, L), computed once
            out = _broadcast_scale_2d(x_slab, scale_slab).reshape(B, D)
            return out, new_logdet
        # else: fall through to the lane-sparse (but still pad-free) path

    out = _broadcast_scale_2d(x, scale)
    return out, new_logdet


def _reference(x, log_scale_vector, logdet, invert=False):
    ldj = jnp.sum(log_scale_vector)
    if invert:
        return jnp.exp(-log_scale_vector) * x, logdet - ldj
    return jnp.exp(log_scale_vector) * x, logdet + ldj


if __name__ == "__main__":
    key = jax.random.PRNGKey(0)
    k_param, k_x, k_ld, k_p2, k_x2, k_p3, k_x3 = jax.random.split(key, 7)

    # --- 1) module-consistent small shapes: batch=2, data_dim=32 ---
    batch, data_dim = 2, 32
    log_scale_vector = jax.random.normal(k_param, (1, data_dim), dtype=jnp.float32)
    x = jax.random.normal(k_x, (batch, data_dim), dtype=jnp.float32)
    logdet = jax.random.normal(k_ld, (1, 1), dtype=jnp.float32)

    out_fwd, ld_fwd = scaling_layer(x, log_scale_vector, logdet, invert=False)
    out_inv, ld_inv = scaling_layer(x, log_scale_vector, logdet, invert=True)
    jax.block_until_ready((out_fwd, ld_fwd, out_inv, ld_inv))

    ref_out_fwd, ref_ld_fwd = _reference(x, log_scale_vector, logdet, invert=False)
    ref_out_inv, ref_ld_inv = _reference(x, log_scale_vector, logdet, invert=True)
    assert jnp.allclose(out_fwd, ref_out_fwd, rtol=1e-6, atol=1e-6)
    assert jnp.allclose(ld_fwd, ref_ld_fwd, rtol=1e-6, atol=1e-6)
    assert jnp.allclose(out_inv, ref_out_inv, rtol=1e-6, atol=1e-6)
    assert jnp.allclose(ld_inv, ref_ld_inv, rtol=1e-6, atol=1e-6)

    # --- 2) lane-dense slab path: D=32 (D % 128 != 0), B divisible by 128/D ---
    B2, D2 = 2048, 32
    ls2 = jax.random.normal(k_p2, (1, D2), dtype=jnp.float32)
    x2 = jax.random.normal(k_x2, (B2, D2), dtype=jnp.float32)
    out2, ld2 = scaling_layer(x2, ls2, logdet, invert=False)
    ref2, ref_ld2 = _reference(x2, ls2, logdet, invert=False)
    jax.block_until_ready((out2, ld2))
    assert jnp.allclose(out2, ref2, rtol=1e-6, atol=1e-6)
    assert jnp.allclose(ld2, ref_ld2, rtol=1e-5, atol=1e-5)

    # --- 3) ragged multi-tile grid: lane-dense D, B not tile-aligned (no pad) ---
    B3, D3 = 3000, 1024
    ls3 = jax.random.normal(k_p3, (1, D3), dtype=jnp.float32)
    x3 = jax.random.normal(k_x3, (B3, D3), dtype=jnp.float32)
    out3, ld3 = scaling_layer(x3, ls3, logdet, invert=True)
    ref3, ref_ld3 = _reference(x3, ls3, logdet, invert=True)
    jax.block_until_ready((out3, ld3))
    assert jnp.allclose(out3, ref3, rtol=1e-6, atol=1e-6)
    assert jnp.allclose(ld3, ref_ld3, rtol=1e-5, atol=1e-5)

    print("KERNEL_OK")
</pallas_src>

<mosaic_0001>
module attributes {stable_mosaic.version = 11 : i64} {
  func.func @_scale_kernel(%arg0: i32, %arg1: memref<2x32xf32, #tpu.memory_space<vmem>>, %arg2: memref<1x32xf32, #tpu.memory_space<vmem>>, %arg3: memref<2x32xf32, #tpu.memory_space<vmem>>) attributes {dimension_semantics = [#tpu.dimension_semantics<parallel>], iteration_bounds = array<i64: 1>, scalar_prefetch = 0 : i64, scratch_operands = 0 : i64, tpu.core_type = #tpu.core_type<tc>, window_params = [{transform_indices = @transform_0, window_bounds = array<i64: 2, 32>}, {pipeline_mode = #tpu.pipeline_mode<synchronous>, transform_indices = @transform_1, window_bounds = array<i64: 1, 32>}, {transform_indices = @transform_2, window_bounds = array<i64: 2, 32>}]} {
    %c0 = arith.constant 0 : index
    %c0_0 = arith.constant 0 : index
    %0 = vector.load %arg1[%c0, %c0_0] : memref<2x32xf32, #tpu.memory_space<vmem>>, vector<2x32xf32>
    %c0_1 = arith.constant 0 : index
    %c0_2 = arith.constant 0 : index
    %1 = vector.load %arg2[%c0_1, %c0_2] : memref<1x32xf32, #tpu.memory_space<vmem>>, vector<1x32xf32>
    %2 = vector.broadcast %1 : vector<1x32xf32> to vector<2x32xf32>
    %3 = arith.mulf %0, %2 : vector<2x32xf32>
    %c0_3 = arith.constant 0 : index
    %c0_4 = arith.constant 0 : index
    %4 = vector.load %arg3[%c0_3, %c0_4] : memref<2x32xf32, #tpu.memory_space<vmem>>, vector<2x32xf32>
    tpu.vector_store %arg3[%c0_3, %c0_4], %3 {strides = array<i32>} : memref<2x32xf32, #tpu.memory_space<vmem>>, vector<2x32xf32>,
    return
  }
  func.func @transform_0(%arg0: i32) -> (i32, i32) {
    %c0_i32 = arith.constant 0 : i32
    %c0_i32_0 = arith.constant 0 : i32
    return %arg0, %c0_i32 : i32, i32
  }
  func.func @transform_1(%arg0: i32) -> (i32, i32) {
    %c0_i32 = arith.constant 0 : i32
    %c0_i32_0 = arith.constant 0 : i32
    %c0_i32_1 = arith.constant 0 : i32
    return %c0_i32, %c0_i32_0 : i32, i32
  }
  func.func @transform_2(%arg0: i32) -> (i32, i32) {
    %c0_i32 = arith.constant 0 : i32
    %c0_i32_0 = arith.constant 0 : i32
    return %arg0, %c0_i32 : i32, i32
  }
}

</mosaic_0001>

<llo_original>
// kernel: tpu_custom_call.1
$region0: #{tpu_custom_call.1}
  #allocation0 [shape = 'u32[]', space=smem, size = 0x4, offset = 0x4, fixed_abs, tag = 'smem constant byte address 0x4 - core index']
  #allocation1 [shape = 'u32[72,128]{1,0:T(1,128)}', space=vmem, size = 0x9000, scoped, tag = 'internal scratch']
  %s0 = inlined_call_operand.hbm [shape: f32[2,32], index: 0, kind: input, shape index: {}]
  %s1 = inlined_call_operand.hbm [shape: f32[1,32], index: 1, kind: input, shape index: {}]
  %s2 = inlined_call_operand.hbm [shape: f32[2,32], index: 2, kind: output, shape index: {}]
  %s3 = sld [smem:[#allocation0]]
  $region26: #{tpu_custom_call.1} parent=0
    _
  %s5 = ssub.s32 1, %s3
  %s6 = scalar_select 0, %s5, %s3
  $region1: #{tpu_custom_call.1} parent=0
    #allocation2 [shape = 'u8[1024]{0}', space=vmem, size = 0x400, scoped, tag = 'input window, operand 0, single buffered']
    #allocation3 [shape = 's32[1]{0}', space=sflag, size = 0x4, scoped, tag = 'scoped memory for tpu_custom_call.1']
    #allocation4 [shape = 's32[1]{0}', space=sflag, size = 0x4, scoped, tag = 'scoped memory for tpu_custom_call.1']
    #allocation5 [shape = 'u8[512]{0}', space=vmem, size = 0x400, scoped, tag = 'input window, operand 1, single buffered']
    #allocation6 [shape = 's32[1]{0}', space=sflag, size = 0x4, scoped, tag = 'scoped memory for tpu_custom_call.1']
    #allocation7 [shape = 'u8[1024]{0}', space=vmem, size = 0x400, scoped, tag = 'output window, operand 0, single buffered']
    %7 = vsyncpa [#allocation3], 0
    %8 = vsyncpa [#allocation6], 0
    %9 = vsyncpa [#allocation4], 0
    // Predicated region
    $region2: #{tpu_custom_call.1} parent=1 // pred_check
      _
    $region3: #{tpu_custom_call.1} parent=1 // pred_check_branch
      %11 = sbr.rel (0) target = $region5
    $region4: #{tpu_custom_call.1} parent=1 // pred_region
      %13 = vsyncadd [#allocation3], 0
      %s15 = sshll.u32 %s0, 4
      %s16 = int_to_ptr.hbm [resolvable:$true] %s15
      %s17 = sshll.u32 [#allocation2], 4
      %s18 = int_to_ptr.vmem [resolvable:$true] %s17
      %20 = dma.hbm_to_vmem [thread:$0]  %s16, 32, %s18, [#allocation3]
    $region5: #{tpu_custom_call.1} parent=1 // pred_fallthru
      _
    // Predicated region
    $region6: #{tpu_custom_call.1} parent=1 // pred_check
      _
    $region7: #{tpu_custom_call.1} parent=1 // pred_check_branch
      %22 = sbr.rel (0) target = $region9
    $region8: #{tpu_custom_call.1} parent=1 // pred_region
      %24 = vsyncadd [#allocation6], 0
      %s26 = sshll.u32 %s1, 4
      %s27 = int_to_ptr.hbm [resolvable:$true] %s26
      %s28 = sshll.u32 [#allocation5], 4
      %s29 = int_to_ptr.vmem [resolvable:$true] %s28
      %31 = dma.hbm_to_vmem [thread:$0]  %s27, 16, %s29, [#allocation6]
    $region9: #{tpu_custom_call.1} parent=1 // pred_fallthru
      _
    // Predicated region
    $region10: #{tpu_custom_call.1} parent=1 // pred_check
      _
    $region11: #{tpu_custom_call.1} parent=1 // pred_check_branch
      %33 = sbr.rel (0) target = $region13
    $region12: #{tpu_custom_call.1} parent=1 // pred_region
      %35 = dma.done [#allocation3], 32
    $region13: #{tpu_custom_call.1} parent=1 // pred_fallthru
      _
    // Predicated region
    $region14: #{tpu_custom_call.1} parent=1 // pred_check
      _
    $region15: #{tpu_custom_call.1} parent=1 // pred_check_branch
      %37 = sbr.rel (0) target = $region17
    $region16: #{tpu_custom_call.1} parent=1 // pred_region
      %39 = dma.done [#allocation6], 16
    $region17: #{tpu_custom_call.1} parent=1 // pred_fallthru
      _
    %v40 = vld [vmem:[#allocation2] sm:$0x3]
    %v41 = vld [vmem:[#allocation5] sm:$0x1]
    %v43 = vperm.slane %v41, 0
    %v45 = vmul.f32 %v40, %v43
    %vm46 = vcmask 254976
    %47 = vst.msk [vmem:[#allocation7] sm:$0x3] %vm46, %v45
    // Predicated region
    $region18: #{tpu_custom_call.1} parent=1 // pred_check
      _
    $region19: #{tpu_custom_call.1} parent=1 // pred_check_branch
      %49 = sbr.rel (0) target = $region21
    $region20: #{tpu_custom_call.1} parent=1 // pred_region
      %51 = vsyncadd [#allocation4], 0
      %s53 = sshll.u32 [#allocation7], 4
      %s54 = int_to_ptr.vmem [resolvable:$true] %s53
      %s55 = sshll.u32 %s2, 4
      %s56 = int_to_ptr.hbm [resolvable:$true] %s55
      %58 = dma.vmem_to_hbm [thread:$0]  %s54, 32, %s56, [#allocation4]
    $region21: #{tpu_custom_call.1} parent=1 // pred_fallthru
      _
    // Predicated region
    $region22: #{tpu_custom_call.1} parent=1 // pred_check
      _
    $region23: #{tpu_custom_call.1} parent=1 // pred_check_branch
      %60 = sbr.rel (0) target = $region25
    $region24: #{tpu_custom_call.1} parent=1 // pred_region
      %62 = dma.done [#allocation4], 32
    $region25: #{tpu_custom_call.1} parent=1 // pred_fallthru
      _
    %63 = vsyncpa [#allocation3], 1
    %64 = vsyncpa [#allocation6], 1
    %65 = vsyncpa [#allocation4], 1

</llo_original>
